<compile_context>
chip_gen: v7x
topology: tpu7x:2x2x1
jax: 0.10.0
libtpu: 0.0.40
codegen_flags: <defaults>
</compile_context>

<pallas_src>
import jax
import jax.numpy as jnp
from jax.experimental import pallas as pl
from jax.experimental.pallas import tpu as pltpu


def _round_up(x, m):
    return (x + m - 1) // m * m


# ---------------------------------------------------------------------------
# Kernels
# ---------------------------------------------------------------------------
def _cd_kernel_single_k(x_ref, w_ref, b_ref, o_ref):
    """K fits in one block: matmul + bias, written straight to the output tile."""
    acc = jnp.dot(x_ref[...], w_ref[...], preferred_element_type=jnp.float32)
    o_ref[...] = (acc + b_ref[...].astype(jnp.float32)).astype(o_ref.dtype)


def _cd_kernel_multi_k(x_ref, w_ref, b_ref, o_ref, acc_ref):
    """K is tiled: accumulate in f32 scratch; bias-add + cast on the last K step."""
    k = pl.program_id(2)

    @pl.when(k == 0)
    def _init():
        acc_ref[...] = jnp.zeros_like(acc_ref)

    acc_ref[...] += jnp.dot(x_ref[...], w_ref[...],
                            preferred_element_type=jnp.float32)

    @pl.when(k == pl.num_programs(2) - 1)
    def _finalize():
        o_ref[...] = (acc_ref[...] + b_ref[...].astype(jnp.float32)).astype(o_ref.dtype)


# ---------------------------------------------------------------------------
# Wrapper
# ---------------------------------------------------------------------------
def _build_combined_params(w_real, b_real, w_imag, b_imag, dtype):
    """Block-diagonal, channel-interleaved fused weight/bias.

    w_*: (in_channel, out_channel)  (already transposed vs torch's (out, in))
    Returns w_c: (2*in_channel, 2*out_channel), b_c: (1, 2*out_channel).
    In a real model these are static parameters and would be built once.
    """
    zeros = jnp.zeros_like(w_real)
    w4 = jnp.stack(
        [jnp.stack([w_real, zeros], axis=-1),    # rows 2k   -> real outputs (cols 2n)
         jnp.stack([zeros, w_imag], axis=-1)],   # rows 2k+1 -> imag outputs (cols 2n+1)
        axis=1)                                  # (K, 2, N, 2)
    K, _, N, _ = w4.shape
    w_c = w4.reshape(2 * K, 2 * N).astype(dtype)
    b_c = jnp.stack([b_real, b_imag], axis=-1).reshape(1, 2 * N).astype(dtype)
    return w_c, b_c


def _pick_tiles(B, Kc, Nc):
    # Batch tile: full extent when small, otherwise 512 rows (B padded up).
    if B <= 512:
        tm, Bp = max(B, 1), B
    else:
        tm = 512
        Bp = _round_up(B, tm)
    # Output tile (lanes): keep lane-dense; multiples of 128 when tiled.
    if Nc <= 1024:
        tn = Nc
    elif Nc % 256 == 0:
        tn = 256
    elif Nc % 128 == 0:
        tn = 128
    else:
        tn = Nc
    # Reduction tile.
    if Kc <= 2048:
        tk = Kc
    elif Kc % 512 == 0:
        tk = 512
    elif Kc % 128 == 0:
        tk = 128
    else:
        tk = Kc
    return tm, tn, tk, Bp


def complex_dense(x, w_real, b_real, w_imag, b_imag, *, min_rows_for_pallas=0):
    """ComplexDense forward.

    x:   (..., in_channel, 2)   -- [..., 0] real, [..., 1] imag
    w_*: (in_channel, out_channel)  (transposed vs torch nn.Linear.weight)
    b_*: (out_channel,)
    returns (..., out_channel, 2) in x.dtype (f32 or bf16; f32 accumulation).

    min_rows_for_pallas: below this many flattened batch rows the call falls
    back to plain XLA (per-call / per-grid-step overhead beats the kernel for
    tiny problems; ~2048 is a reasonable production threshold).  Default 0
    always uses the Pallas kernel so this script exercises it.
    """
    *lead, in_channel, two = x.shape
    assert two == 2, "last axis must be the (real, imag) axis"
    out_channel = w_real.shape[1]
    out_dtype = x.dtype

    # Free row-major view: (..., K, 2) -> (rows, 2K). Columns are interleaved
    # [r0, i0, r1, i1, ...]; the interleaved block-diagonal weight absorbs the
    # de-interleave, so no extra HBM pass happens here.
    x2 = x.reshape(-1, 2 * in_channel)
    B = x2.shape[0]

    if B < min_rows_for_pallas:
        r = x[..., 0] @ w_real.astype(out_dtype) + b_real.astype(out_dtype)
        i = x[..., 1] @ w_imag.astype(out_dtype) + b_imag.astype(out_dtype)
        return jnp.stack((r, i), axis=-1)

    w_c, b_c = _build_combined_params(w_real, b_real, w_imag, b_imag, out_dtype)
    Kc, Nc = w_c.shape

    tm, tn, tk, Bp = _pick_tiles(B, Kc, Nc)
    if Bp != B:
        x2 = jnp.pad(x2, ((0, Bp - B), (0, 0)))

    nm, nn, nk = Bp // tm, Nc // tn, Kc // tk
    kernel = _cd_kernel_single_k if nk == 1 else _cd_kernel_multi_k
    scratch = [] if nk == 1 else [pltpu.VMEM((tm, tn), jnp.float32)]

    # VMEM budget: double-buffered input/output tiles (+ f32 accumulator).
    itemsize = jnp.dtype(out_dtype).itemsize
    est = 2 * (tm * tk + tk * tn + tn) * itemsize + 2 * tm * tn * itemsize
    if nk > 1:
        est += tm * tn * 4
    vmem_limit = int(min(max(est * 3 // 2, 32 * 1024 * 1024), 64 * 1024 * 1024))

    out2 = pl.pallas_call(
        kernel,
        out_shape=jax.ShapeDtypeStruct((Bp, Nc), out_dtype),
        grid=(nm, nn, nk),
        in_specs=[
            pl.BlockSpec((tm, tk), lambda i, j, k: (i, k)),   # activations
            pl.BlockSpec((tk, tn), lambda i, j, k: (k, j)),   # fused weight (batch-invariant)
            pl.BlockSpec((1, tn), lambda i, j, k: (0, j)),    # fused bias   (batch-invariant)
        ],
        out_specs=pl.BlockSpec((tm, tn), lambda i, j, k: (i, j)),
        scratch_shapes=scratch,
        compiler_params=pltpu.CompilerParams(
            dimension_semantics=("parallel", "parallel", "arbitrary"),
            vmem_limit_bytes=vmem_limit,
        ),
    )(x2, w_c, b_c)

    if Bp != B:
        out2 = out2[:B]
    # Free view back: column 2n is the real output, 2n+1 the imag output,
    # i.e. exactly torch.stack((real, imag), dim=-1).
    return out2.reshape(*lead, out_channel, 2)


if __name__ == "__main__":
    key = jax.random.PRNGKey(0)
    k_x, k_wr, k_br, k_wi, k_bi, k_x2 = jax.random.split(key, 6)

    # ---- Test 1: small demo shapes (f32), single grid step -----------------
    batch, seq, in_channel, out_channel = 2, 8, 32, 32
    x = jax.random.normal(k_x, (batch, seq, in_channel, 2), dtype=jnp.float32)

    bound = 1.0 / (in_channel ** 0.5)
    w_real = jax.random.uniform(k_wr, (in_channel, out_channel), jnp.float32, -bound, bound)
    b_real = jax.random.uniform(k_br, (out_channel,), jnp.float32, -bound, bound)
    w_imag = jax.random.uniform(k_wi, (in_channel, out_channel), jnp.float32, -bound, bound)
    b_imag = jax.random.uniform(k_bi, (out_channel,), jnp.float32, -bound, bound)

    out = complex_dense(x, w_real, b_real, w_imag, b_imag)
    jax.block_until_ready(out)

    ref = jnp.stack((x[..., 0] @ w_real + b_real,
                     x[..., 1] @ w_imag + b_imag), axis=-1)
    assert out.shape == (batch, seq, out_channel, 2)
    assert jnp.allclose(out, ref, atol=1e-5, rtol=1e-5), "f32 mismatch"

    # ---- Test 2: multi-tile batch grid + padding + bf16 path ----------------
    B2, in2, out2_c = 1056, 64, 64        # 1056 rows -> tm=512, padded to 1536 (3 batch tiles)
    xb = jax.random.normal(k_x2, (B2, in2, 2), dtype=jnp.float32)
    wr2 = jax.random.uniform(k_wr, (in2, out2_c), jnp.float32, -0.1, 0.1)
    wi2 = jax.random.uniform(k_wi, (in2, out2_c), jnp.float32, -0.1, 0.1)
    br2 = jax.random.uniform(k_br, (out2_c,), jnp.float32, -0.1, 0.1)
    bi2 = jax.random.uniform(k_bi, (out2_c,), jnp.float32, -0.1, 0.1)

    out_bf = complex_dense(xb.astype(jnp.bfloat16),
                           wr2.astype(jnp.bfloat16), br2.astype(jnp.bfloat16),
                           wi2.astype(jnp.bfloat16), bi2.astype(jnp.bfloat16))
    jax.block_until_ready(out_bf)

    xbf = xb.astype(jnp.bfloat16).astype(jnp.float32)
    wrf = wr2.astype(jnp.bfloat16).astype(jnp.float32)
    wif = wi2.astype(jnp.bfloat16).astype(jnp.float32)
    brf = br2.astype(jnp.bfloat16).astype(jnp.float32)
    bif = bi2.astype(jnp.bfloat16).astype(jnp.float32)
    ref2 = jnp.stack((xbf[..., 0] @ wrf + brf, xbf[..., 1] @ wif + bif), axis=-1)
    assert out_bf.shape == (B2, out2_c, 2)
    assert out_bf.dtype == jnp.bfloat16
    assert jnp.allclose(out_bf.astype(jnp.float32), ref2, atol=5e-2, rtol=5e-2), "bf16 mismatch"

    print("KERNEL_OK")
</pallas_src>

<mosaic_0001>
module attributes {stable_mosaic.version = 11 : i64} {
  func.func @_cd_kernel_single_k(%arg0: i32, %arg1: i32, %arg2: i32, %arg3: memref<16x64xf32, #tpu.memory_space<vmem>>, %arg4: memref<64x64xf32, #tpu.memory_space<vmem>>, %arg5: memref<1x64xf32, #tpu.memory_space<vmem>>, %arg6: memref<16x64xf32, #tpu.memory_space<vmem>>) attributes {dimension_semantics = [#tpu.dimension_semantics<parallel>, #tpu.dimension_semantics<parallel>, #tpu.dimension_semantics<arbitrary>], iteration_bounds = array<i64: 1, 1, 1>, scalar_prefetch = 0 : i64, scratch_operands = 0 : i64, tpu.core_type = #tpu.core_type<tc>, window_params = [{transform_indices = @transform_0, window_bounds = array<i64: 16, 64>}, {transform_indices = @transform_1, window_bounds = array<i64: 64, 64>}, {transform_indices = @transform_2, window_bounds = array<i64: 1, 64>}, {transform_indices = @transform_3, window_bounds = array<i64: 16, 64>}]} {
    %c0 = arith.constant 0 : index
    %c0_0 = arith.constant 0 : index
    %0 = vector.load %arg3[%c0, %c0_0] : memref<16x64xf32, #tpu.memory_space<vmem>>, vector<16x64xf32>
    %c0_1 = arith.constant 0 : index
    %c0_2 = arith.constant 0 : index
    %1 = vector.load %arg4[%c0_1, %c0_2] : memref<64x64xf32, #tpu.memory_space<vmem>>, vector<64x64xf32>
    %cst = arith.constant dense<0.000000e+00> : vector<16x64xf32>
    %2 = tpu.matmul %0, %1, %cst {dimension_numbers = #tpu.dot_dimension_numbers<[1], [0], [0], [1], [0, 0, 1, 1], [], []>} : vector<16x64xf32>, vector<64x64xf32>, vector<16x64xf32> -> vector<16x64xf32>
    %c0_3 = arith.constant 0 : index
    %c0_4 = arith.constant 0 : index
    %3 = vector.load %arg5[%c0_3, %c0_4] : memref<1x64xf32, #tpu.memory_space<vmem>>, vector<1x64xf32>
    %4 = vector.broadcast %3 : vector<1x64xf32> to vector<16x64xf32>
    %5 = arith.addf %2, %4 : vector<16x64xf32>
    %c0_5 = arith.constant 0 : index
    %c0_6 = arith.constant 0 : index
    %6 = vector.load %arg6[%c0_5, %c0_6] : memref<16x64xf32, #tpu.memory_space<vmem>>, vector<16x64xf32>
    tpu.vector_store %arg6[%c0_5, %c0_6], %5 {strides = array<i32>} : memref<16x64xf32, #tpu.memory_space<vmem>>, vector<16x64xf32>,
    return
  }
  func.func @transform_0(%arg0: i32, %arg1: i32, %arg2: i32) -> (i32, i32) {
    %c0_i32 = arith.constant 0 : i32
    return %arg0, %arg2 : i32, i32
  }
  func.func @transform_1(%arg0: i32, %arg1: i32, %arg2: i32) -> (i32, i32) {
    %c0_i32 = arith.constant 0 : i32
    return %arg2, %arg1 : i32, i32
  }
  func.func @transform_2(%arg0: i32, %arg1: i32, %arg2: i32) -> (i32, i32) {
    %c0_i32 = arith.constant 0 : i32
    %c0_i32_0 = arith.constant 0 : i32
    return %c0_i32, %arg1 : i32, i32
  }
  func.func @transform_3(%arg0: i32, %arg1: i32, %arg2: i32) -> (i32, i32) {
    %c0_i32 = arith.constant 0 : i32
    return %arg0, %arg1 : i32, i32
  }
}

</mosaic_0001>

<llo_original>
// kernel: tpu_custom_call.1
$region0: #{tpu_custom_call.1}
  #allocation0 [shape = 'u32[]', space=smem, size = 0x4, offset = 0x4, fixed_abs, tag = 'smem constant byte address 0x4 - core index']
  #allocation1 [shape = 'u32[144,128]{1,0:T(1,128)}', space=vmem, size = 0x12000, scoped, tag = 'internal scratch']
  %s0 = inlined_call_operand.hbm [shape: f32[16,64], index: 0, kind: input, shape index: {}]
  %s1 = inlined_call_operand.hbm [shape: f32[64,64], index: 1, kind: input, shape index: {}]
  %s2 = inlined_call_operand.vmem [shape: f32[1,64], index: 2, kind: input, shape index: {}]
  %s3 = inlined_call_operand.hbm [shape: f32[16,64], index: 3, kind: output, shape index: {}]
  %s4 = sld [smem:[#allocation0]]
  $region30: #{tpu_custom_call.1} parent=0
    _
  %s6 = ssub.s32 1, %s4
  %s7 = scalar_select 0, %s6, %s4
  $region1: #{tpu_custom_call.1} parent=0
    #allocation2 [shape = 'u8[8192]{0}', space=vmem, size = 0x2000, scoped, tag = 'input window, operand 0, single buffered']
    #allocation3 [shape = 's32[1]{0}', space=sflag, size = 0x4, scoped, tag = 'scoped memory for tpu_custom_call.1']
    #allocation4 [shape = 's32[1]{0}', space=sflag, size = 0x4, scoped, tag = 'scoped memory for tpu_custom_call.1']
    #allocation5 [shape = 'u8[32768]{0}', space=vmem, size = 0x8000, scoped, tag = 'input window, operand 1, single buffered']
    #allocation6 [shape = 's32[1]{0}', space=sflag, size = 0x4, scoped, tag = 'scoped memory for tpu_custom_call.1']
    #allocation7 [shape = 'u8[8192]{0}', space=vmem, size = 0x2000, scoped, tag = 'output window, operand 0, single buffered']
    %8 = vsyncpa [#allocation3], 0
    %9 = vsyncpa [#allocation6], 0
    %10 = vsyncpa [#allocation4], 0
    // Predicated region
    $region2: #{tpu_custom_call.1} parent=1 // pred_check
      _
    $region3: #{tpu_custom_call.1} parent=1 // pred_check_branch
      %12 = sbr.rel (0) target = $region5
    $region4: #{tpu_custom_call.1} parent=1 // pred_region
      %s14 = ssub.s32 256, 256
      %15 = vsyncadd [#allocation3], %s14
      %s16 = sshll.u32 [#allocation2], 4
      %s17 = int_to_ptr.vmem [resolvable:$true] %s16
      %22 = dma.hbm_to_vmem [thread:$0]  %s0, 256, %s17, [#allocation3], 128, 128, 8
    $region5: #{tpu_custom_call.1} parent=1 // pred_fallthru
      _
    // Predicated region
    $region6: #{tpu_custom_call.1} parent=1 // pred_check
      _
    $region7: #{tpu_custom_call.1} parent=1 // pred_check_branch
      %24 = sbr.rel (0) target = $region9
    $region8: #{tpu_custom_call.1} parent=1 // pred_region
      %s26 = ssub.s32 1024, 1024
      %27 = vsyncadd [#allocation6], %s26
      %s28 = sshll.u32 [#allocation5], 4
      %s29 = int_to_ptr.vmem [resolvable:$true] %s28
      %34 = dma.hbm_to_vmem [thread:$0]  %s1, 1024, %s29, [#allocation6], 128, 128, 8
    $region9: #{tpu_custom_call.1} parent=1 // pred_fallthru
      _
    // Predicated region
    $region10: #{tpu_custom_call.1} parent=1 // pred_check
      _
    $region11: #{tpu_custom_call.1} parent=1 // pred_check_branch
      %36 = sbr.rel (0) target = $region13
    $region12: #{tpu_custom_call.1} parent=1 // pred_region
      _
    $region13: #{tpu_custom_call.1} parent=1 // pred_fallthru
      _
    // Predicated region
    $region14: #{tpu_custom_call.1} parent=1 // pred_check
      _
    $region15: #{tpu_custom_call.1} parent=1 // pred_check_branch
      %38 = sbr.rel (0) target = $region17
    $region16: #{tpu_custom_call.1} parent=1 // pred_region
      %39 = dma.done [#allocation3], 256
    $region17: #{tpu_custom_call.1} parent=1 // pred_fallthru
      _
    // Predicated region
    $region18: #{tpu_custom_call.1} parent=1 // pred_check
      _
    $region19: #{tpu_custom_call.1} parent=1 // pred_check_branch
      %41 = sbr.rel (0) target = $region21
    $region20: #{tpu_custom_call.1} parent=1 // pred_region
      %42 = dma.done [#allocation6], 1024
    $region21: #{tpu_custom_call.1} parent=1 // pred_fallthru
      _
    %v43 = vld [vmem:[#allocation2] sm:$0xff]
    %v44 = vld [vmem:[#allocation2 + $0x8] sm:$0xff]
    %v45 = vld [vmem:[#allocation5] sm:$0xff]
    %v46 = vld [vmem:[#allocation5 + $0x8] sm:$0xff]
    %v47 = vld [vmem:[#allocation5 + $0x10] sm:$0xff]
    %v48 = vld [vmem:[#allocation5 + $0x18] sm:$0xff]
    %v49 = vld [vmem:[#allocation5 + $0x20] sm:$0xff]
    %v50 = vld [vmem:[#allocation5 + $0x28] sm:$0xff]
    %v51 = vld [vmem:[#allocation5 + $0x30] sm:$0xff]
    %v52 = vld [vmem:[#allocation5 + $0x38] sm:$0xff]
    %v53 = vld [vmem:[%s2] sm:$0x1]
    %v55 = vlaneseq
    %v56 = vshrl.u32 %v55, 7
    %v57 = vsub.s32 0, %v56
    %v58 = vrot.slane %v53, %v57
    %vm60 = vcmask 523264
    %v62 = vsel %vm60, %v43, 0
    %v65 = vsel %vm60, %v44, 0
    %67 = vmatprep.subr.mxu0 0.0
    %68 = vmatpush1.msra.mxu0 %v45
    %69 = vmatprep.subr.mxu0 0.0
    %70 = vmatpush1.msra.mxu0 %v46
    %71 = vmatprep.subr.mxu0 0.0
    %72 = vmatpush1.msra.mxu0 %v47
    %73 = vmatprep.subr.mxu0 0.0
    %74 = vmatpush1.msra.mxu0 %v48
    %75 = vmatprep.subr.mxu0 0.0
    %76 = vmatpush1.msra.mxu0 %v49
    %77 = vmatprep.subr.mxu0 0.0
    %78 = vmatpush1.msra.mxu0 %v50
    %79 = vmatprep.subr.mxu0 0.0
    %80 = vmatpush1.msra.mxu0 %v51
    %81 = vmatprep.subr.mxu0 0.0
    %82 = vmatpush1.msra.mxu0 %v52
    %83 = vmatprep.subr.mxu0 0.0
    %84 = vmatpush1.msra.mxu0 0.0
    %85 = vmatprep.subr.mxu0 0.0
    %86 = vmatpush1.msra.mxu0 0.0
    %87 = vmatprep.subr.mxu0 0.0
    %88 = vmatpush1.msra.mxu0 0.0
    %89 = vmatprep.subr.mxu0 0.0
    %90 = vmatpush1.msra.mxu0 0.0
    %91 = vmatprep.subr.mxu0 0.0
    %92 = vmatpush1.msra.mxu0 0.0
    %93 = vmatprep.subr.mxu0 0.0
    %94 = vmatpush1.msra.mxu0 0.0
    %95 = vmatprep.subr.mxu0 0.0
    %96 = vmatpush1.msra.mxu0 0.0
    %97 = vmatprep.subr.mxu0 0.0
    %98 = vmatpush1.msra.mxu0 0.0
    %99 = vmatprep.subr.mxu0 0.0
    %100 = vmatpush1.msra.mxu0 0.0
    %101 = vmatprep.subr.mxu0 0.0
    %102 = vmatpush1.msra.mxu0 0.0
    %103 = vmatprep.subr.mxu0 0.0
    %104 = vmatpush1.msra.mxu0 0.0
    %105 = vmatprep.subr.mxu0 0.0
    %106 = vmatpush1.msra.mxu0 0.0
    %107 = vmatprep.subr.mxu0 0.0
    %108 = vmatpush1.msra.mxu0 0.0
    %109 = vmatprep.subr.mxu0 0.0
    %110 = vmatpush1.msra.mxu0 0.0
    %111 = vmatprep.subr.mxu0 0.0
    %112 = vmatpush1.msra.mxu0 0.0
    %113 = vmatprep.subr.mxu0 0.0
    %114 = vmatpush1.msra.mxu0 0.0
    %115 = vmatprep.subr.mxu0 0.0
    %116 = vmatpush1.msra.mxu0 0.0
    %117 = vmatprep.subr.mxu0 0.0
    %118 = vmatpush1.msra.mxu0 0.0
    %119 = vmatprep.subr.mxu0 0.0
    %120 = vmatpush1.msra.mxu0 0.0
    %121 = vmatprep.subr.mxu0 0.0
    %122 = vmatpush1.msra.mxu0 0.0
    %123 = vmatprep.subr.mxu0 0.0
    %124 = vmatpush1.msra.mxu0 0.0
    %125 = vmatprep.subr.mxu0 0.0
    %126 = vmatpush1.msra.mxu0 0.0
    %127 = vmatprep.subr.mxu0 0.0
    %128 = vmatpush1.msra.mxu0 0.0
    %129 = vmatprep.subr.mxu0 0.0
    %130 = vmatpush1.msra.mxu0 0.0
    %131 = vmatprep.mubr.f32.mxu0 0.0
    %132 = vmatmul.mubr.f32.gmra.mrb[0].mxu0 %v62
    %v133 = vpop.f32.mrb[0].mxu0
    %v134 = vadd.f32 %v58, %v133
    %v135 = vpop.f32.mrb[0].mxu0
    %136 = vmatprep.mubr.f32.mxu0 0.0
    %137 = vmatmul.mubr.f32.gmra.mrb[0].mxu0 %v65
    %v138 = vpop.f32.mrb[0].mxu0
    %v139 = vadd.f32 %v58, %v138
    %v140 = vpop.f32.mrb[0].mxu0
    %141 = vdwg.mxu0
    %142 = vst.msk [vmem:[#allocation7] sm:$0xff] %vm60, %v134
    %143 = vst.msk [vmem:[#allocation7 + $0x8] sm:$0xff] %vm60, %v139
    // Predicated region
    $region22: #{tpu_custom_call.1} parent=1 // pred_check
      _
    $region23: #{tpu_custom_call.1} parent=1 // pred_check_branch
      %145 = sbr.rel (0) target = $region25
    $region24: #{tpu_custom_call.1} parent=1 // pred_region
      %s147 = ssub.s32 256, 256
      %148 = vsyncadd [#allocation4], %s147
      %s149 = sshll.u32 [#allocation7], 4
      %s150 = int_to_ptr.vmem [resolvable:$true] %s149
      %155 = dma.vmem_to_hbm [thread:$0]  %s150, 256, %s3, [#allocation4], 128, 128, 8
    $region25: #{tpu_custom_call.1} parent=1 // pred_fallthru
      _
    // Predicated region
    $region26: #{tpu_custom_call.1} parent=1 // pred_check
      _
    $region27: #{tpu_custom_call.1} parent=1 // pred_check_branch
      %157 = sbr.rel (0) target = $region29
    $region28: #{tpu_custom_call.1} parent=1 // pred_region
      %158 = dma.done [#allocation4], 256
    $region29: #{tpu_custom_call.1} parent=1 // pred_fallthru
      _
    %159 = vsyncpa [#allocation3], 1
    %160 = vsyncpa [#allocation6], 1
    %161 = vsyncpa [#allocation4], 1

</llo_original>
